<compile_context>
chip_gen: v7x
topology: tpu7x:2x2x1
jax: 0.10.0
libtpu: 0.0.40
codegen_flags: <defaults>
</compile_context>

<pallas_src>
import functools

import jax
import jax.numpy as jnp
from jax.experimental import pallas as pl
from jax.experimental.pallas import tpu as pltpu


def _round_up(n, m):
    return ((n + m - 1) // m) * m


_SMALL_ROWS = 8192   # whole-array-VMEM path ceiling (~8.4 MB f32 in+out, safe on v5e's 16 MiB scoped default)


# ---------------------------------------------------------------------------
# Grid-less kernel: whole-array VMEM operands, row-major (rows, D) layout.
# Used for small / stated problem sizes.
# ---------------------------------------------------------------------------
def _mlp_small_kernel(x_ref, w1_ref, b1_ref, w2_ref, b2_ref, o_ref):
    # x_ref : (rows, D)   w1_ref : (D, H)   b1_ref : (1, H)
    # w2_ref: (H, D)      b2_ref : (1, D)   o_ref  : (rows, D)
    h = jnp.dot(x_ref[...], w1_ref[...], preferred_element_type=jnp.float32)
    h = jnp.tanh(h + b1_ref[...])
    y = jnp.dot(h, w2_ref[...], preferred_element_type=jnp.float32) + b2_ref[...]
    o_ref[...] = y.astype(o_ref.dtype)


# ---------------------------------------------------------------------------
# Tiled feature-major kernel: rows on the lane axis (lane-dense DMA).
# Kept only as the "rows is huge" scaling path.
# ---------------------------------------------------------------------------
def _mlp_tiled_kernel(xT_ref, w1t_ref, b1_ref, w2t_ref, b2_ref, oT_ref):
    # xT_ref : (D, TILE)   w1t_ref : (H, D)   b1_ref : (H, 1)
    # w2t_ref: (D, H)      b2_ref  : (D, 1)   oT_ref : (D, TILE)
    h = jnp.dot(w1t_ref[...], xT_ref[...], preferred_element_type=jnp.float32)
    h = jnp.tanh(h + b1_ref[...])
    y = jnp.dot(w2t_ref[...], h, preferred_element_type=jnp.float32) + b2_ref[...]
    oT_ref[...] = y.astype(oT_ref.dtype)


def pack_params(params):
    """Pre-cast / reshape / transpose the weights ONCE (not per forward call)."""
    D, H = params["w1"].shape
    w1 = jnp.asarray(params["w1"], jnp.float32)    # (D, H)
    b1 = jnp.asarray(params["b1"], jnp.float32)    # (H,)
    w2 = jnp.asarray(params["w2"], jnp.float32)    # (H, D)
    b2 = jnp.asarray(params["b2"], jnp.float32)    # (D,)
    return {
        # row-major layout (grid-less small path)
        "w1": w1, "b1_row": b1.reshape(1, H),
        "w2": w2, "b2_row": b2.reshape(1, D),
        # feature-major layout (tiled scaling path)
        "w1t": w1.T, "b1_col": b1.reshape(H, 1),
        "w2t": w2.T, "b2_col": b2.reshape(D, 1),
        "D": D, "H": H,
    }


def ode_nn_forward(X, packed, *, num_trajectories, num_timesteps, M,
                   max_tile_cols=131072):
    """Pallas implementation of ODE_NN.forward.

    X: array reshapeable to (num_trajectories * (num_timesteps - M), D)
    packed: output of pack_params().
    Returns (rows, D) matching the PyTorch forward.
    """
    D = packed["D"]
    rows = num_trajectories * (num_timesteps - M)
    vmem = pltpu.MemorySpace.VMEM

    if rows <= _SMALL_ROWS:
        # Grid-less path: whole-array VMEM operands, no pipelining, no wrapper
        # transpose/pad/slice.  The reshape below is a row-major collapse
        # (zero-copy bitcast in XLA).
        x2d = jnp.reshape(X, (rows, D))
        return pl.pallas_call(
            _mlp_small_kernel,
            out_shape=jax.ShapeDtypeStruct((rows, D), X.dtype),
            in_specs=[pl.BlockSpec(memory_space=vmem)] * 5,
            out_specs=pl.BlockSpec(memory_space=vmem),
        )(x2d, packed["w1"], packed["b1_row"], packed["w2"], packed["b2_row"])

    # ---- Scaling path: feature-major lane-dense tiling over the row axis.
    xT = jnp.reshape(X, (rows, D)).T                       # (D, rows)
    # >= 2 grid steps so v7x's two TensorCores both get work; cap the tile so
    # the pipelined footprint (~128 * tile bytes in+out, double-buffered) stays
    # well inside the scoped-VMEM budget set below.
    tile = min(max_tile_cols, _round_up(-(-rows // 2), 128))
    rows_p = _round_up(rows, tile)
    if rows_p != rows:
        xT = jnp.pad(xT, ((0, 0), (0, rows_p - rows)))
    grid = (rows_p // tile,)

    outT = pl.pallas_call(
        _mlp_tiled_kernel,
        out_shape=jax.ShapeDtypeStruct((D, rows_p), X.dtype),
        grid_spec=pltpu.PrefetchScalarGridSpec(
            num_scalar_prefetch=0,
            grid=grid,
            in_specs=[
                pl.BlockSpec((D, tile), lambda i: (0, i)),   # X^T tile
                pl.BlockSpec(memory_space=vmem),             # W1^T (resident)
                pl.BlockSpec(memory_space=vmem),             # b1
                pl.BlockSpec(memory_space=vmem),             # W2^T (resident)
                pl.BlockSpec(memory_space=vmem),             # b2
            ],
            out_specs=pl.BlockSpec((D, tile), lambda i: (0, i)),
        ),
        compiler_params=pltpu.CompilerParams(
            dimension_semantics=("parallel",),
            vmem_limit_bytes=48 << 20,   # headroom under v7x's 64 MiB physical
        ),
    )(xT, packed["w1t"], packed["b1_col"], packed["w2t"], packed["b2_col"])

    # Back to the PyTorch output layout (rows, D); drop any tail padding.
    return outT[:, :rows].T


def init_params(key, D, H):
    """Deterministic init mimicking torch.nn.Linear (uniform +/- 1/sqrt(fan_in))."""
    k1, k2, k3, k4 = jax.random.split(key, 4)
    lim1 = 1.0 / jnp.sqrt(jnp.float32(D))
    lim2 = 1.0 / jnp.sqrt(jnp.float32(H))
    return {
        "w1": jax.random.uniform(k1, (D, H), jnp.float32, -lim1, lim1),
        "b1": jax.random.uniform(k2, (H,), jnp.float32, -lim1, lim1),
        "w2": jax.random.uniform(k3, (H, D), jnp.float32, -lim2, lim2),
        "b2": jax.random.uniform(k4, (D,), jnp.float32, -lim2, lim2),
    }


def reference_forward(X, params, *, num_trajectories, num_timesteps, M):
    D = params["w1"].shape[0]
    rows = num_trajectories * (num_timesteps - M)
    x2d = jnp.reshape(X, (rows, D)).astype(jnp.float32)
    h = jnp.tanh(x2d @ params["w1"] + params["b1"][None, :])
    return h @ params["w2"] + params["b2"][None, :]


if __name__ == "__main__":
    # Damped-oscillator style data: D=2 (position, velocity), 1 trajectory.
    num_trajectories = 1
    num_timesteps = 136          # total timesteps in the training data X
    M = 8                        # multistep order -> rows = 1 * (136 - 8) = 128
    D = 2                        # num_dimensions
    H = 32                       # num_neurons (constructor arg)
    dt = 0.01                    # unused in forward, kept for fidelity
    # TODO(synk): alpha/beta multistep coefficients (from linear_multistep) only
    # affect _y_predicted / train, not forward, so they are omitted here.

    key = jax.random.PRNGKey(0)
    kx, kp = jax.random.split(key)
    params = init_params(kp, D, H)
    packed = pack_params(params)   # pre-pack once (hoisted out of the fwd path)

    rows = num_trajectories * (num_timesteps - M)
    X = jax.random.normal(kx, (num_trajectories, num_timesteps - M, D),
                          dtype=jnp.float32)

    fwd = functools.partial(ode_nn_forward,
                            num_trajectories=num_trajectories,
                            num_timesteps=num_timesteps, M=M)

    # 1) Stated problem size -> grid-less whole-array-VMEM path.
    out = jax.block_until_ready(fwd(X, packed))
    ref = reference_forward(X, params,
                            num_trajectories=num_trajectories,
                            num_timesteps=num_timesteps, M=M)
    assert out.shape == (rows, D), out.shape
    assert jnp.allclose(out, ref, atol=1e-5, rtol=1e-5), "mismatch vs reference"

    # 2) rows not a multiple of 8/128 -> still the grid-less path (full-array
    #    block shapes are exempt from the (8,128) constraint).
    nt2, M2 = 143, 8                         # rows2 = 135
    rows2 = 1 * (nt2 - M2)
    X2 = jax.random.normal(jax.random.PRNGKey(1), (1, nt2 - M2, D),
                           dtype=jnp.float32)
    out2 = jax.block_until_ready(
        ode_nn_forward(X2, packed, num_trajectories=1, num_timesteps=nt2, M=M2))
    ref2 = reference_forward(X2, params,
                             num_trajectories=1, num_timesteps=nt2, M=M2)
    assert out2.shape == (rows2, D), out2.shape
    assert jnp.allclose(out2, ref2, atol=1e-5, rtol=1e-5), "tail mismatch"

    # 3) Large-rows scaling path (feature-major tiled, >=2 parallel grid steps).
    nt3, M3 = 10008, 8                       # rows3 = 10000
    rows3 = 1 * (nt3 - M3)
    X3 = jax.random.normal(jax.random.PRNGKey(2), (1, nt3 - M3, D),
                           dtype=jnp.float32)
    out3 = jax.block_until_ready(
        ode_nn_forward(X3, packed, num_trajectories=1, num_timesteps=nt3, M=M3))
    ref3 = reference_forward(X3, params,
                             num_trajectories=1, num_timesteps=nt3, M=M3)
    assert out3.shape == (rows3, D), out3.shape
    assert jnp.allclose(out3, ref3, atol=1e-5, rtol=1e-5), "tiled-path mismatch"

    print("KERNEL_OK")
</pallas_src>

<mosaic_0001>
module attributes {stable_mosaic.version = 11 : i64} {
  func.func @_mlp_small_kernel(%arg0: memref<128x2xf32, #tpu.memory_space<vmem>>, %arg1: memref<2x32xf32, #tpu.memory_space<vmem>>, %arg2: memref<1x32xf32, #tpu.memory_space<vmem>>, %arg3: memref<32x2xf32, #tpu.memory_space<vmem>>, %arg4: memref<1x2xf32, #tpu.memory_space<vmem>>, %arg5: memref<128x2xf32, #tpu.memory_space<vmem>>) attributes {dimension_semantics = [], scalar_prefetch = 0 : i64, scratch_operands = 0 : i64, tpu.core_type = #tpu.core_type<tc>} {
    %c0 = arith.constant 0 : index
    %c0_0 = arith.constant 0 : index
    %0 = vector.load %arg0[%c0, %c0_0] : memref<128x2xf32, #tpu.memory_space<vmem>>, vector<128x2xf32>
    %c0_1 = arith.constant 0 : index
    %c0_2 = arith.constant 0 : index
    %1 = vector.load %arg1[%c0_1, %c0_2] : memref<2x32xf32, #tpu.memory_space<vmem>>, vector<2x32xf32>
    %cst = arith.constant dense<0.000000e+00> : vector<128x32xf32>
    %2 = tpu.matmul %0, %1, %cst {dimension_numbers = #tpu.dot_dimension_numbers<[1], [0], [0], [1], [0, 0, 1, 1], [], []>} : vector<128x2xf32>, vector<2x32xf32>, vector<128x32xf32> -> vector<128x32xf32>
    %c0_3 = arith.constant 0 : index
    %c0_4 = arith.constant 0 : index
    %3 = vector.load %arg2[%c0_3, %c0_4] : memref<1x32xf32, #tpu.memory_space<vmem>>, vector<1x32xf32>
    %4 = vector.broadcast %3 : vector<1x32xf32> to vector<128x32xf32>
    %5 = arith.addf %2, %4 : vector<128x32xf32>
    %6 = math.tanh %5 : vector<128x32xf32>
    %c0_5 = arith.constant 0 : index
    %c0_6 = arith.constant 0 : index
    %7 = vector.load %arg3[%c0_5, %c0_6] : memref<32x2xf32, #tpu.memory_space<vmem>>, vector<32x2xf32>
    %cst_7 = arith.constant dense<0.000000e+00> : vector<128x2xf32>
    %8 = tpu.matmul %6, %7, %cst_7 {dimension_numbers = #tpu.dot_dimension_numbers<[1], [0], [0], [1], [0, 0, 1, 1], [], []>} : vector<128x32xf32>, vector<32x2xf32>, vector<128x2xf32> -> vector<128x2xf32>
    %c0_8 = arith.constant 0 : index
    %c0_9 = arith.constant 0 : index
    %9 = vector.load %arg4[%c0_8, %c0_9] : memref<1x2xf32, #tpu.memory_space<vmem>>, vector<1x2xf32>
    %10 = vector.broadcast %9 : vector<1x2xf32> to vector<128x2xf32>
    %11 = arith.addf %8, %10 : vector<128x2xf32>
    %c0_10 = arith.constant 0 : index
    %c0_11 = arith.constant 0 : index
    %12 = vector.load %arg5[%c0_10, %c0_11] : memref<128x2xf32, #tpu.memory_space<vmem>>, vector<128x2xf32>
    tpu.vector_store %arg5[%c0_10, %c0_11], %11 {strides = array<i32>} : memref<128x2xf32, #tpu.memory_space<vmem>>, vector<128x2xf32>,
    return
  }
}

</mosaic_0001>

<llo_original>
// kernel: tpu_custom_call.1
$region0: #{tpu_custom_call.1}
  #allocation0 [shape = 'u32[]', space=smem, size = 0x4, offset = 0x4, fixed_abs, tag = 'smem constant byte address 0x4 - core index']
  #allocation1 [shape = 'u32[144,128]{1,0:T(1,128)}', space=vmem, size = 0x12000, scoped, tag = 'internal scratch']
  %s0 = inlined_call_operand.vmem [shape: f32[128,2], index: 0, kind: input, shape index: {}]
  %s1 = inlined_call_operand.vmem [shape: f32[2,32], index: 1, kind: input, shape index: {}]
  %s2 = inlined_call_operand.vmem [shape: f32[1,32], index: 2, kind: input, shape index: {}]
  %s3 = inlined_call_operand.vmem [shape: f32[32,2], index: 3, kind: input, shape index: {}]
  %s4 = inlined_call_operand.vmem [shape: f32[1,2], index: 4, kind: input, shape index: {}]
  %s5 = inlined_call_operand.vmem [shape: f32[128,2], index: 5, kind: output, shape index: {}]
  %s6 = sld [smem:[#allocation0]]
  $region30: #{tpu_custom_call.1} parent=0
    _
  %s8 = ssub.s32 1, %s6
  %s9 = scalar_select 0, %s8, %s6
  // Predicated region
  $region2: #{tpu_custom_call.1} parent=0 // pred_check
    _
  $region3: #{tpu_custom_call.1} parent=0 // pred_check_branch
    %11 = sbr.rel (0) target = $region5
  $region4: #{tpu_custom_call.1} parent=0 // pred_region
    _
  $region5: #{tpu_custom_call.1} parent=0 // pred_fallthru
    _
  // Predicated region
  $region6: #{tpu_custom_call.1} parent=0 // pred_check
    _
  $region7: #{tpu_custom_call.1} parent=0 // pred_check_branch
    %13 = sbr.rel (0) target = $region9
  $region8: #{tpu_custom_call.1} parent=0 // pred_region
    _
  $region9: #{tpu_custom_call.1} parent=0 // pred_fallthru
    _
  // Predicated region
  $region10: #{tpu_custom_call.1} parent=0 // pred_check
    _
  $region11: #{tpu_custom_call.1} parent=0 // pred_check_branch
    %15 = sbr.rel (0) target = $region13
  $region12: #{tpu_custom_call.1} parent=0 // pred_region
    _
  $region13: #{tpu_custom_call.1} parent=0 // pred_fallthru
    _
  // Predicated region
  $region14: #{tpu_custom_call.1} parent=0 // pred_check
    _
  $region15: #{tpu_custom_call.1} parent=0 // pred_check_branch
    %17 = sbr.rel (0) target = $region17
  $region16: #{tpu_custom_call.1} parent=0 // pred_region
    _
  $region17: #{tpu_custom_call.1} parent=0 // pred_fallthru
    _
  // Predicated region
  $region18: #{tpu_custom_call.1} parent=0 // pred_check
    _
  $region19: #{tpu_custom_call.1} parent=0 // pred_check_branch
    %19 = sbr.rel (0) target = $region21
  $region20: #{tpu_custom_call.1} parent=0 // pred_region
    _
  $region21: #{tpu_custom_call.1} parent=0 // pred_fallthru
    _
  %v20 = vld [vmem:[%s0] sm:$0xff]
  %v21 = vld [vmem:[%s0 + $0x8] sm:$0xff]
  %v22 = vld [vmem:[%s0 + $0x10] sm:$0xff]
  %v23 = vld [vmem:[%s0 + $0x18] sm:$0xff]
  %v24 = vld [vmem:[%s0 + $0x20] sm:$0xff]
  %v25 = vld [vmem:[%s0 + $0x28] sm:$0xff]
  %v26 = vld [vmem:[%s0 + $0x30] sm:$0xff]
  %v27 = vld [vmem:[%s0 + $0x38] sm:$0xff]
  %v28 = vld [vmem:[%s0 + $0x40] sm:$0xff]
  %v29 = vld [vmem:[%s0 + $0x48] sm:$0xff]
  %v30 = vld [vmem:[%s0 + $0x50] sm:$0xff]
  %v31 = vld [vmem:[%s0 + $0x58] sm:$0xff]
  %v32 = vld [vmem:[%s0 + $0x60] sm:$0xff]
  %v33 = vld [vmem:[%s0 + $0x68] sm:$0xff]
  %v34 = vld [vmem:[%s0 + $0x70] sm:$0xff]
  %v35 = vld [vmem:[%s0 + $0x78] sm:$0xff]
  %v36 = vld [vmem:[%s1] sm:$0x3]
  %v37 = vld [vmem:[%s2] sm:$0x1]
  %v39 = vlaneseq
  %v40 = vshrl.u32 %v39, 7
  %v41 = vsub.s32 0, %v40
  %v42 = vrot.slane %v37, %v41
  %vm44 = vcmask 15360
  %v46 = vsel %vm44, %v20, 0
  %v49 = vsel %vm44, %v21, 0
  %v52 = vsel %vm44, %v22, 0
  %v55 = vsel %vm44, %v23, 0
  %v58 = vsel %vm44, %v24, 0
  %v61 = vsel %vm44, %v25, 0
  %v64 = vsel %vm44, %v26, 0
  %v67 = vsel %vm44, %v27, 0
  %v70 = vsel %vm44, %v28, 0
  %v73 = vsel %vm44, %v29, 0
  %v76 = vsel %vm44, %v30, 0
  %v79 = vsel %vm44, %v31, 0
  %v82 = vsel %vm44, %v32, 0
  %v85 = vsel %vm44, %v33, 0
  %v88 = vsel %vm44, %v34, 0
  %v91 = vsel %vm44, %v35, 0
  %vm93 = vcmask 1041408
  %v95 = vsel %vm93, %v36, 0
  %97 = vmatprep.subr.mxu0 0.0
  %98 = vmatpush1.msra.mxu0 %v95
  %99 = vmatprep.subr.mxu0 0.0
  %100 = vmatpush1.msra.mxu0 0.0
  %101 = vmatprep.subr.mxu0 0.0
  %102 = vmatpush1.msra.mxu0 0.0
  %103 = vmatprep.subr.mxu0 0.0
  %104 = vmatpush1.msra.mxu0 0.0
  %105 = vmatprep.subr.mxu0 0.0
  %106 = vmatpush1.msra.mxu0 0.0
  %107 = vmatprep.subr.mxu0 0.0
  %108 = vmatpush1.msra.mxu0 0.0
  %109 = vmatprep.subr.mxu0 0.0
  %110 = vmatpush1.msra.mxu0 0.0
  %111 = vmatprep.subr.mxu0 0.0
  %112 = vmatpush1.msra.mxu0 0.0
  %113 = vmatprep.subr.mxu0 0.0
  %114 = vmatpush1.msra.mxu0 0.0
  %115 = vmatprep.subr.mxu0 0.0
  %116 = vmatpush1.msra.mxu0 0.0
  %117 = vmatprep.subr.mxu0 0.0
  %118 = vmatpush1.msra.mxu0 0.0
  %119 = vmatprep.subr.mxu0 0.0
  %120 = vmatpush1.msra.mxu0 0.0
  %121 = vmatprep.subr.mxu0 0.0
  %122 = vmatpush1.msra.mxu0 0.0
  %123 = vmatprep.subr.mxu0 0.0
  %124 = vmatpush1.msra.mxu0 0.0
  %125 = vmatprep.subr.mxu0 0.0
  %126 = vmatpush1.msra.mxu0 0.0
  %127 = vmatprep.subr.mxu0 0.0
  %128 = vmatpush1.msra.mxu0 0.0
  %129 = vmatprep.subr.mxu0 0.0
  %130 = vmatpush1.msra.mxu0 0.0
  %131 = vmatprep.subr.mxu0 0.0
  %132 = vmatpush1.msra.mxu0 0.0
  %133 = vmatprep.subr.mxu0 0.0
  %134 = vmatpush1.msra.mxu0 0.0
  %135 = vmatprep.subr.mxu0 0.0
  %136 = vmatpush1.msra.mxu0 0.0
  %137 = vmatprep.subr.mxu0 0.0
  %138 = vmatpush1.msra.mxu0 0.0
  %139 = vmatprep.subr.mxu0 0.0
  %140 = vmatpush1.msra.mxu0 0.0
  %141 = vmatprep.subr.mxu0 0.0
  %142 = vmatpush1.msra.mxu0 0.0
  %143 = vmatprep.subr.mxu0 0.0
  %144 = vmatpush1.msra.mxu0 0.0
  %145 = vmatprep.subr.mxu0 0.0
  %146 = vmatpush1.msra.mxu0 0.0
  %147 = vmatprep.subr.mxu0 0.0
  %148 = vmatpush1.msra.mxu0 0.0
  %149 = vmatprep.subr.mxu0 0.0
  %150 = vmatpush1.msra.mxu0 0.0
  %151 = vmatprep.subr.mxu0 0.0
  %152 = vmatpush1.msra.mxu0 0.0
  %153 = vmatprep.subr.mxu0 0.0
  %154 = vmatpush1.msra.mxu0 0.0
  %155 = vmatprep.subr.mxu0 0.0
  %156 = vmatpush1.msra.mxu0 0.0
  %157 = vmatprep.subr.mxu0 0.0
  %158 = vmatpush1.msra.mxu0 0.0
  %159 = vmatprep.subr.mxu0 0.0
  %160 = vmatpush1.msra.mxu0 0.0
  %161 = vmatprep.mubr.f32.mxu0 0.0
  %162 = vmatmul.mubr.f32.gmra.mrb[0].mxu0 %v46
  %v163 = vpop.f32.mrb[0].mxu0
  %v164 = vadd.f32 %v42, %v163
  %v165 = vpop.f32.mrb[0].mxu0
  %166 = vmatprep.mubr.f32.mxu0 0.0
  %167 = vmatmul.mubr.f32.gmra.mrb[0].mxu0 %v49
  %v168 = vpop.f32.mrb[0].mxu0
  %v169 = vadd.f32 %v42, %v168
  %v170 = vpop.f32.mrb[0].mxu0
  %171 = vmatprep.mubr.f32.mxu0 0.0
  %172 = vmatmul.mubr.f32.gmra.mrb[0].mxu0 %v52
  %v173 = vpop.f32.mrb[0].mxu0
  %v174 = vadd.f32 %v42, %v173
  %v175 = vpop.f32.mrb[0].mxu0
  %176 = vmatprep.mubr.f32.mxu0 0.0
  %177 = vmatmul.mubr.f32.gmra.mrb[0].mxu0 %v55
  %v178 = vpop.f32.mrb[0].mxu0
  %v179 = vadd.f32 %v42, %v178
  %v180 = vpop.f32.mrb[0].mxu0
  %181 = vmatprep.mubr.f32.mxu0 0.0
  %182 = vmatmul.mubr.f32.gmra.mrb[0].mxu0 %v58
  %v183 = vpop.f32.mrb[0].mxu0
  %v184 = vadd.f32 %v42, %v183
  %v185 = vpop.f32.mrb[0].mxu0
  %186 = vmatprep.mubr.f32.mxu0 0.0
  %187 = vmatmul.mubr.f32.gmra.mrb[0].mxu0 %v61
  %v188 = vpop.f32.mrb[0].mxu0
  %v189 = vadd.f32 %v42, %v188
  %v190 = vpop.f32.mrb[0].mxu0
  %191 = vmatprep.mubr.f32.mxu0 0.0
  %192 = vmatmul.mubr.f32.gmra.mrb[0].mxu0 %v64
  %v193 = vpop.f32.mrb[0].mxu0
  %v194 = vadd.f32 %v42, %v193
  %v195 = vpop.f32.mrb[0].mxu0
  %196 = vmatprep.mubr.f32.mxu0 0.0
  %197 = vmatmul.mubr.f32.gmra.mrb[0].mxu0 %v67
  %v198 = vpop.f32.mrb[0].mxu0
  %v199 = vadd.f32 %v42, %v198
  %v200 = vpop.f32.mrb[0].mxu0
  %201 = vmatprep.mubr.f32.mxu0 0.0
  %202 = vmatmul.mubr.f32.gmra.mrb[0].mxu0 %v70
  %v203 = vpop.f32.mrb[0].mxu0
  %v204 = vadd.f32 %v42, %v203
  %v205 = vpop.f32.mrb[0].mxu0
  %206 = vmatprep.mubr.f32.mxu0 0.0
  %207 = vmatmul.mubr.f32.gmra.mrb[0].mxu0 %v73
  %v208 = vpop.f32.mrb[0].mxu0
  %v209 = vadd.f32 %v42, %v208
  %v210 = vpop.f32.mrb[0].mxu0
  %211 = vmatprep.mubr.f32.mxu0 0.0
  %212 = vmatmul.mubr.f32.gmra.mrb[0].mxu0 %v76
  %v213 = vpop.f32.mrb[0].mxu0
  %v214 = vadd.f32 %v42, %v213
  %v215 = vpop.f32.mrb[0].mxu0
  %216 = vmatprep.mubr.f32.mxu0 0.0
  %217 = vmatmul.mubr.f32.gmra.mrb[0].mxu0 %v79
  %v218 = vpop.f32.mrb[0].mxu0
  %v219 = vadd.f32 %v42, %v218
  %v220 = vpop.f32.mrb[0].mxu0
  %221 = vmatprep.mubr.f32.mxu0 0.0
  %222 = vmatmul.mubr.f32.gmra.mrb[0].mxu0 %v82
  %v223 = vpop.f32.mrb[0].mxu0
  %v224 = vadd.f32 %v42, %v223
  %v225 = vpop.f32.mrb[0].mxu0
  %226 = vmatprep.mubr.f32.mxu0 0.0
  %227 = vmatmul.mubr.f32.gmra.mrb[0].mxu0 %v85
  %v228 = vpop.f32.mrb[0].mxu0
  %v229 = vadd.f32 %v42, %v228
  %v230 = vpop.f32.mrb[0].mxu0
  %231 = vmatprep.mubr.f32.mxu0 0.0
  %232 = vmatmul.mubr.f32.gmra.mrb[0].mxu0 %v88
  %v233 = vpop.f32.mrb[0].mxu0
  %v234 = vadd.f32 %v42, %v233
  %v235 = vpop.f32.mrb[0].mxu0
  %236 = vmatprep.mubr.f32.mxu0 0.0
  %237 = vmatmul.mubr.f32.gmra.mrb[0].mxu0 %v91
  %v238 = vpop.f32.mrb[0].mxu0
  %v239 = vadd.f32 %v42, %v238
  %v240 = vpop.f32.mrb[0].mxu0
  %241 = vdwg.mxu0
  %v242 = vtanh.pop %v164
  %v243 = vtanh.pop %v169
  %v244 = vtanh.pop %v174
  %v245 = vtanh.pop %v179
  %v246 = vtanh.pop %v184
  %v247 = vtanh.pop %v189
  %v248 = vtanh.pop %v194
  %v249 = vtanh.pop %v199
  %v250 = vtanh.pop %v204
  %v251 = vtanh.pop %v209
  %v252 = vtanh.pop %v214
  %v253 = vtanh.pop %v219
  %v254 = vtanh.pop %v224
  %v255 = vtanh.pop %v229
  %v256 = vtanh.pop %v234
  %v257 = vtanh.pop %v239
  %v258 = vld [vmem:[%s3] sm:$0xff]
  %v259 = vld [vmem:[%s3 + $0x8] sm:$0xff]
  %v260 = vld [vmem:[%s3 + $0x10] sm:$0xff]
  %v261 = vld [vmem:[%s3 + $0x18] sm:$0xff]
  %v262 = vld [vmem:[%s4] sm:$0x1]
  %v264 = vlaneseq
  %v265 = vshrl.u32 %v264, 7
  %v266 = vsub.s32 0, %v265
  %v267 = vrot.slane %v262, %v266
  %vm269 = vcmask 261120
  %v271 = vsel %vm269, %v242, 0
  %v274 = vsel %vm269, %v243, 0
  %v277 = vsel %vm269, %v244, 0
  %v280 = vsel %vm269, %v245, 0
  %v283 = vsel %vm269, %v246, 0
  %v286 = vsel %vm269, %v247, 0
  %v289 = vsel %vm269, %v248, 0
  %v292 = vsel %vm269, %v249, 0
  %v295 = vsel %vm269, %v250, 0
  %v298 = vsel %vm269, %v251, 0
  %v301 = vsel %vm269, %v252, 0
  %v304 = vsel %vm269, %v253, 0
  %v307 = vsel %vm269, %v254, 0
  %v310 = vsel %vm269, %v255, 0
  %v313 = vsel %vm269, %v256, 0
  %v316 = vsel %vm269, %v257, 0
  %318 = vmatprep.subr.mxu0 0.0
  %319 = vmatpush1.msra.mxu0 %v258
  %320 = vmatprep.subr.mxu0 0.0
  %321 = vmatpush1.msra.mxu0 %v259
  %322 = vmatprep.subr.mxu0 0.0
  %323 = vmatpush1.msra.mxu0 %v260
  %324 = vmatprep.subr.mxu0 0.0
  %325 = vmatpush1.msra.mxu0 %v261
  %326 = vmatprep.subr.mxu0 0.0
  %327 = vmatpush1.msra.mxu0 0.0
  %328 = vmatprep.subr.mxu0 0.0
  %329 = vmatpush1.msra.mxu0 0.0
  %330 = vmatprep.subr.mxu0 0.0
  %331 = vmatpush1.msra.mxu0 0.0
  %332 = vmatprep.subr.mxu0 0.0
  %333 = vmatpush1.msra.mxu0 0.0
  %334 = vmatprep.subr.mxu0 0.0
  %335 = vmatpush1.msra.mxu0 0.0
  %336 = vmatprep.subr.mxu0 0.0
  %337 = vmatpush1.msra.mxu0 0.0
  %338 = vmatprep.subr.mxu0 0.0
  %339 = vmatpush1.msra.mxu0 0.0
  %340 = vmatprep.subr.mxu0 0.0
  %341 = vmatpush1.msra.mxu0 0.0
  %342 = vmatprep.subr.mxu0 0.0
  %343 = vmatpush1.msra.mxu0 0.0
  %344 = vmatprep.subr.mxu0 0.0
  %345 = vmatpush1.msra.mxu0 0.0
  %346 = vmatprep.subr.mxu0 0.0
  %347 = vmatpush1.msra.mxu0 0.0
  %348 = vmatprep.subr.mxu0 0.0
  %349 = vmatpush1.msra.mxu0 0.0
  %350 = vmatprep.subr.mxu0 0.0
  %351 = vmatpush1.msra.mxu0 0.0
  %352 = vmatprep.subr.mxu0 0.0
  %353 = vmatpush1.msra.mxu0 0.0
  %354 = vmatprep.subr.mxu0 0.0
  %355 = vmatpush1.msra.mxu0 0.0
  %356 = vmatprep.subr.mxu0 0.0
  %357 = vmatpush1.msra.mxu0 0.0
  %358 = vmatprep.subr.mxu0 0.0
  %359 = vmatpush1.msra.mxu0 0.0
  %360 = vmatprep.subr.mxu0 0.0
  %361 = vmatpush1.msra.mxu0 0.0
  %362 = vmatprep.subr.mxu0 0.0
  %363 = vmatpush1.msra.mxu0 0.0
  %364 = vmatprep.subr.mxu0 0.0
  %365 = vmatpush1.msra.mxu0 0.0
  %366 = vmatprep.subr.mxu0 0.0
  %367 = vmatpush1.msra.mxu0 0.0
  %368 = vmatprep.subr.mxu0 0.0
  %369 = vmatpush1.msra.mxu0 0.0
  %370 = vmatprep.subr.mxu0 0.0
  %371 = vmatpush1.msra.mxu0 0.0
  %372 = vmatprep.subr.mxu0 0.0
  %373 = vmatpush1.msra.mxu0 0.0
  %374 = vmatprep.subr.mxu0 0.0
  %375 = vmatpush1.msra.mxu0 0.0
  %376 = vmatprep.subr.mxu0 0.0
  %377 = vmatpush1.msra.mxu0 0.0
  %378 = vmatprep.subr.mxu0 0.0
  %379 = vmatpush1.msra.mxu0 0.0
  %380 = vmatprep.subr.mxu0 0.0
  %381 = vmatpush1.msra.mxu0 0.0
  %382 = vmatprep.mubr.f32.mxu0 0.0
  %383 = vmatmul.mubr.f32.gmra.mrb[0].mxu0 %v271
  %v384 = vpop.f32.mrb[0].mxu0
  %v385 = vadd.f32 %v267, %v384
  %v386 = vpop.f32.mrb[0].mxu0
  %387 = vmatprep.mubr.f32.mxu0 0.0
  %388 = vmatmul.mubr.f32.gmra.mrb[0].mxu0 %v274
  %v389 = vpop.f32.mrb[0].mxu0
  %v390 = vadd.f32 %v267, %v389
  %v391 = vpop.f32.mrb[0].mxu0
  %392 = vmatprep.mubr.f32.mxu0 0.0
  %393 = vmatmul.mubr.f32.gmra.mrb[0].mxu0 %v277
  %v394 = vpop.f32.mrb[0].mxu0
  %v395 = vadd.f32 %v267, %v394
  %v396 = vpop.f32.mrb[0].mxu0
  %397 = vmatprep.mubr.f32.mxu0 0.0
  %398 = vmatmul.mubr.f32.gmra.mrb[0].mxu0 %v280
  %v399 = vpop.f32.mrb[0].mxu0
  %v400 = vadd.f32 %v267, %v399
  %v401 = vpop.f32.mrb[0].mxu0
  %402 = vmatprep.mubr.f32.mxu0 0.0
  %403 = vmatmul.mubr.f32.gmra.mrb[0].mxu0 %v283
  %v404 = vpop.f32.mrb[0].mxu0
  %v405 = vadd.f32 %v267, %v404
  %v406 = vpop.f32.mrb[0].mxu0
  %407 = vmatprep.mubr.f32.mxu0 0.0
  %408 = vmatmul.mubr.f32.gmra.mrb[0].mxu0 %v286
  %v409 = vpop.f32.mrb[0].mxu0
  %v410 = vadd.f32 %v267, %v409
  %v411 = vpop.f32.mrb[0].mxu0
  %412 = vmatprep.mubr.f32.mxu0 0.0
  %413 = vmatmul.mubr.f32.gmra.mrb[0].mxu0 %v289
  %v414 = vpop.f32.mrb[0].mxu0
  %v415 = vadd.f32 %v267, %v414
  %v416 = vpop.f32.mrb[0].mxu0
  %417 = vmatprep.mubr.f32.mxu0 0.0
  %418 = vmatmul.mubr.f32.gmra.mrb[0].mxu0 %v292
  %v419 = vpop.f32.mrb[0].mxu0
  %v420 = vadd.f32 %v267, %v419
  %v421 = vpop.f32.mrb[0].mxu0
  %422 = vmatprep.mubr.f32.mxu0 0.0
  %423 = vmatmul.mubr.f32.gmra.mrb[0].mxu0 %v295
  %v424 = vpop.f32.mrb[0].mxu0
  %v425 = vadd.f32 %v267, %v424
  %v426 = vpop.f32.mrb[0].mxu0
  %427 = vmatprep.mubr.f32.mxu0 0.0
  %428 = vmatmul.mubr.f32.gmra.mrb[0].mxu0 %v298
  %v429 = vpop.f32.mrb[0].mxu0
  %v430 = vadd.f32 %v267, %v429
  %v431 = vpop.f32.mrb[0].mxu0
  %432 = vmatprep.mubr.f32.mxu0 0.0
  %433 = vmatmul.mubr.f32.gmra.mrb[0].mxu0 %v301
  %v434 = vpop.f32.mrb[0].mxu0
  %v435 = vadd.f32 %v267, %v434
  %v436 = vpop.f32.mrb[0].mxu0
  %437 = vmatprep.mubr.f32.mxu0 0.0
  %438 = vmatmul.mubr.f32.gmra.mrb[0].mxu0 %v304
  %v439 = vpop.f32.mrb[0].mxu0
  %v440 = vadd.f32 %v267, %v439
  %v441 = vpop.f32.mrb[0].mxu0
  %442 = vmatprep.mubr.f32.mxu0 0.0
  %443 = vmatmul.mubr.f32.gmra.mrb[0].mxu0 %v307
  %v444 = vpop.f32.mrb[0].mxu0
  %v445 = vadd.f32 %v267, %v444
  %v446 = vpop.f32.mrb[0].mxu0
  %447 = vmatprep.mubr.f32.mxu0 0.0
  %448 = vmatmul.mubr.f32.gmra.mrb[0].mxu0 %v310
  %v449 = vpop.f32.mrb[0].mxu0
  %v450 = vadd.f32 %v267, %v449
  %v451 = vpop.f32.mrb[0].mxu0
  %452 = vmatprep.mubr.f32.mxu0 0.0
  %453 = vmatmul.mubr.f32.gmra.mrb[0].mxu0 %v313
  %v454 = vpop.f32.mrb[0].mxu0
  %v455 = vadd.f32 %v267, %v454
  %v456 = vpop.f32.mrb[0].mxu0
  %457 = vmatprep.mubr.f32.mxu0 0.0
  %458 = vmatmul.mubr.f32.gmra.mrb[0].mxu0 %v316
  %v459 = vpop.f32.mrb[0].mxu0
  %v460 = vadd.f32 %v267, %v459
  %v461 = vpop.f32.mrb[0].mxu0
  %462 = vdwg.mxu0
  %463 = vst.msk [vmem:[%s5] sm:$0xff] %vm44, %v385
  %464 = vst.msk [vmem:[%s5 + $0x8] sm:$0xff] %vm44, %v390
  %465 = vst.msk [vmem:[%s5 + $0x10] sm:$0xff] %vm44, %v395
  %466 = vst.msk [vmem:[%s5 + $0x18] sm:$0xff] %vm44, %v400
  %467 = vst.msk [vmem:[%s5 + $0x20] sm:$0xff] %vm44, %v405
  %468 = vst.msk [vmem:[%s5 + $0x28] sm:$0xff] %vm44, %v410
  %469 = vst.msk [vmem:[%s5 + $0x30] sm:$0xff] %vm44, %v415
  %470 = vst.msk [vmem:[%s5 + $0x38] sm:$0xff] %vm44, %v420
  %471 = vst.msk [vmem:[%s5 + $0x40] sm:$0xff] %vm44, %v425
  %472 = vst.msk [vmem:[%s5 + $0x48] sm:$0xff] %vm44, %v430
  %473 = vst.msk [vmem:[%s5 + $0x50] sm:$0xff] %vm44, %v435
  %474 = vst.msk [vmem:[%s5 + $0x58] sm:$0xff] %vm44, %v440
  %475 = vst.msk [vmem:[%s5 + $0x60] sm:$0xff] %vm44, %v445
  %476 = vst.msk [vmem:[%s5 + $0x68] sm:$0xff] %vm44, %v450
  %477 = vst.msk [vmem:[%s5 + $0x70] sm:$0xff] %vm44, %v455
  %478 = vst.msk [vmem:[%s5 + $0x78] sm:$0xff] %vm44, %v460
  // Predicated region
  $region22: #{tpu_custom_call.1} parent=0 // pred_check
    _
  $region23: #{tpu_custom_call.1} parent=0 // pred_check_branch
    %480 = sbr.rel (0) target = $region25
  $region24: #{tpu_custom_call.1} parent=0 // pred_region
    _
  $region25: #{tpu_custom_call.1} parent=0 // pred_fallthru
    _
  // Predicated region
  $region26: #{tpu_custom_call.1} parent=0 // pred_check
    _
  $region27: #{tpu_custom_call.1} parent=0 // pred_check_branch
    %482 = sbr.rel (0) target = $region29
  $region28: #{tpu_custom_call.1} parent=0 // pred_region
    _
  $region29: #{tpu_custom_call.1} parent=0 // pred_fallthru
    _

</llo_original>
